<compile_context>
chip_gen: v7x
topology: tpu7x:2x2x1
jax: 0.10.0
libtpu: 0.0.40
codegen_flags: <defaults>
</compile_context>

<pallas_src>
import functools

import jax
import jax.numpy as jnp
from jax.experimental import pallas as pl
from jax.experimental.pallas import tpu as pltpu


def _round_up(n: int, m: int) -> int:
    return ((n + m - 1) // m) * m


def _vmem_capacity_bytes() -> int:
    """Per-core VMEM capacity (generation-aware) with a conservative fallback."""
    try:
        cap = int(pltpu.get_tpu_info().vmem_capacity_bytes)
        if cap > 0:
            return cap
    except Exception:
        pass
    return 64 << 20  # v7x per-core VMEM; safe lower bound


def _erf(x):
    # Abramowitz & Stegun 7.1.26 (|abs err| < 1.5e-7): only exp/mul/add/where,
    # all of which lower cleanly in Mosaic (exp goes to the EUP slot).
    p = 0.3275911
    a1, a2, a3, a4, a5 = (0.254829592, -0.284496736, 1.421413741,
                          -1.453152027, 1.061405429)
    sgn = jnp.where(x < 0.0, -1.0, 1.0)
    ax = jnp.abs(x)
    t = 1.0 / (1.0 + p * ax)
    poly = ((((a5 * t + a4) * t + a3) * t + a2) * t + a1) * t
    return sgn * (1.0 - poly * jnp.exp(-(ax * ax)))


def _gelu_exact(x):
    # erf-based GELU == torch.nn.GELU() default (approximate='none').
    return 0.5 * x * (1.0 + _erf(x * 0.7071067811865476))


def _ffwd_kernel(x_ref, w1_ref, b1_ref, w2_ref, b2_ref, o_ref, acc_ref, *,
                 n_inner, th):
    # x_ref : (tm, C)  input dtype      w1_ref: (C, bw)  compute dtype
    # b1_ref: (1, bw)  f32              w2_ref: (bw, C)  compute dtype
    # b2_ref: (1, C)   f32              o_ref : (tm, C)  out dtype
    # acc_ref: (tm, C) f32 scratch      bw = n_inner * th
    h_step = pl.program_id(1)

    @pl.when(h_step == 0)
    def _init():
        acc_ref[...] = jnp.zeros_like(acc_ref)

    # Cast x to the matmul dtype in-kernel (VPU cast hides under the MXU and
    # saves a full wrapper-side HBM pass over x).
    x = x_ref[...].astype(w1_ref.dtype)

    # Chunk H so the live f32 GELU intermediate is (tm, th), never (tm, H).
    for j in range(n_inner):
        c0 = j * th
        hid = jnp.dot(x, w1_ref[:, c0:c0 + th],
                      preferred_element_type=jnp.float32)
        hid = _gelu_exact(hid + b1_ref[:, c0:c0 + th])
        acc_ref[...] += jnp.dot(hid.astype(w2_ref.dtype),
                                w2_ref[c0:c0 + th, :],
                                preferred_element_type=jnp.float32)

    @pl.when(h_step == pl.num_programs(1) - 1)
    def _finalize():
        # Dropout (eval mode) is identity.
        o_ref[...] = (acc_ref[...] + b2_ref[...]).astype(o_ref.dtype)


@functools.partial(jax.jit, static_argnames=("tm", "compute_dtype", "h_block"))
def feed_forward(x, w1, b1, w2, b2, *, tm=None, compute_dtype=jnp.bfloat16,
                 h_block=None):
    """FeedForward(x) = Dropout(Linear2(GELU(Linear1(x)))), dropout = identity.

    x: (B, T, C); w1: (C, 4C); b1: (4C,); w2: (4C, C); b2: (C,).
    tm: row tile (None -> auto: 512 on 128 MiB-VMEM chips, else 256).
    compute_dtype: matmul input dtype (accumulation is always f32).
    h_block: override for the streamed hidden-dim block width (testing knob).
    """
    B, T, C = x.shape
    H = w1.shape[1]
    M = B * T
    out_dtype = x.dtype

    x2d = x.reshape(M, C)
    # Weights are only cast when needed -- in production pass them already in
    # compute_dtype so no per-call full-HBM weight cast happens.
    w1c = w1 if w1.dtype == compute_dtype else w1.astype(compute_dtype)
    w2c = w2 if w2.dtype == compute_dtype else w2.astype(compute_dtype)
    b1r = b1.reshape(1, H).astype(jnp.float32)
    b2r = b2.reshape(1, C).astype(jnp.float32)

    x_bytes = jnp.dtype(x.dtype).itemsize
    o_bytes = jnp.dtype(out_dtype).itemsize
    c_bytes = jnp.dtype(compute_dtype).itemsize

    # ---------------- generation-aware tile plan ----------------
    vmem_cap = _vmem_capacity_bytes()
    budget = vmem_cap - (8 << 20)            # headroom for Mosaic scratch

    if tm is None:
        tm = 512 if vmem_cap >= (96 << 20) else 256   # v5e/v6e vs v7x
    tm = max(8, _round_up(tm, 8))
    tm_eff = min(tm, _round_up(M, 8))

    th0 = next((c for c in (512, 256, 128) if H % c == 0), H)

    def vmem_need(tm_, bw_, resident_):
        wbuf = 1 if resident_ else 2                      # weight buffer count
        need = 2 * tm_ * C * (x_bytes + o_bytes)          # x / out row tiles
        need += wbuf * 2 * C * bw_ * c_bytes              # W1 + W2 blocks
        need += wbuf * bw_ * 4 + 2 * C * 4                # b1, b2
        need += tm_ * C * 4                               # f32 accumulator
        need += 2 * tm_ * min(th0, bw_) * (4 + c_bytes)   # live GELU chunk
        return need

    if h_block is not None:
        assert H % h_block == 0 and (h_block == H or h_block % 128 == 0)
        bw = h_block
        resident = (bw == H)
    elif vmem_need(tm_eff, H, True) <= budget:
        bw, resident = H, True                            # weights stay resident
    else:
        bw, resident = th0, False                         # stream H blocks
        while vmem_need(tm_eff, bw, False) > budget and tm_eff > 8:
            tm_eff = max(8, _round_up(tm_eff // 2, 8))

    th = next((c for c in (512, 256, 128) if bw % c == 0), bw)
    n_inner = bw // th
    n_h = H // bw
    n_rows = pl.cdiv(M, tm_eff)

    need = vmem_need(tm_eff, bw, resident)
    vmem_limit = int(min(max(need + (4 << 20), 32 << 20), vmem_cap - (8 << 20)))

    weight_hbm = 2 * C * H * c_bytes + (H + C) * 4
    cost = pl.CostEstimate(
        flops=4 * M * C * H,                              # two matmuls
        transcendentals=M * H,                            # one exp per erf
        bytes_accessed=M * C * (x_bytes + o_bytes)
        + weight_hbm * (1 if resident else int(n_rows)),
    )

    # Resident weights: constant index_map -> single-buffer to halve VMEM.
    wmode = dict(pipeline_mode=pl.Buffered(1)) if resident else {}
    grid_spec = pltpu.PrefetchScalarGridSpec(
        num_scalar_prefetch=0,
        grid=(n_rows, n_h),
        in_specs=[
            pl.BlockSpec((tm_eff, C), lambda i, h: (i, 0)),            # x rows
            pl.BlockSpec((C, bw), lambda i, h: (0, h), **wmode),       # W1
            pl.BlockSpec((1, bw), lambda i, h: (0, h), **wmode),       # b1
            pl.BlockSpec((bw, C), lambda i, h: (h, 0), **wmode),       # W2
            pl.BlockSpec((1, C), lambda i, h: (0, 0),
                         pipeline_mode=pl.Buffered(1)),                # b2
        ],
        out_specs=pl.BlockSpec((tm_eff, C), lambda i, h: (i, 0)),
        scratch_shapes=[pltpu.VMEM((tm_eff, C), jnp.float32)],
    )

    out = pl.pallas_call(
        functools.partial(_ffwd_kernel, n_inner=n_inner, th=th),
        out_shape=jax.ShapeDtypeStruct((M, C), out_dtype),
        grid_spec=grid_spec,
        compiler_params=pltpu.CompilerParams(
            dimension_semantics=("parallel", "arbitrary"),
            vmem_limit_bytes=vmem_limit,
        ),
        cost_estimate=cost,
    )(x2d, w1c, b1r, w2c, b2r)

    return out.reshape(B, T, C)


def _ref(x, w1, b1, w2, b2):
    hp = jax.lax.Precision.HIGHEST
    h = jnp.dot(x, w1, precision=hp) + b1
    h = jax.nn.gelu(h, approximate=False)
    return jnp.dot(h, w2, precision=hp) + b2


if __name__ == "__main__":
    key = jax.random.PRNGKey(0)

    def make(k, B, T, C):
        kx, k1, k2, k3, k4 = jax.random.split(k, 5)
        x = jax.random.normal(kx, (B, T, C), dtype=jnp.float32)
        w1 = jax.random.normal(k1, (C, 4 * C), dtype=jnp.float32) * 0.02
        b1 = jax.random.normal(k2, (4 * C,), dtype=jnp.float32) * 0.02
        w2 = jax.random.normal(k3, (4 * C, C), dtype=jnp.float32) * 0.02
        b2 = jax.random.normal(k4, (C,), dtype=jnp.float32) * 0.02
        return x, w1, b1, w2, b2

    ka, kb = jax.random.split(key)

    # --- config 1: module-sized toy shapes (n_embd=32, B=2, T=8) -----------
    x, w1, b1, w2, b2 = make(ka, 2, 8, 32)
    y_ref = _ref(x, w1, b1, w2, b2)

    # f32 compute path (resident weights).
    y32 = feed_forward(x, w1, b1, w2, b2, compute_dtype=jnp.float32)
    jax.block_until_ready(y32)
    assert y32.shape == x.shape
    assert jnp.max(jnp.abs(y32 - y_ref)) < 2e-3, "f32 path mismatch vs reference"

    # bf16-matmul / f32-accumulate path; weights pre-cast ONCE outside the call
    # (production pattern: no per-call HBM weight cast).
    w1_bf, w2_bf = w1.astype(jnp.bfloat16), w2.astype(jnp.bfloat16)
    ybf = feed_forward(x, w1_bf, b1, w2_bf, b2, compute_dtype=jnp.bfloat16)
    jax.block_until_ready(ybf)
    assert ybf.shape == x.shape
    assert jnp.max(jnp.abs(ybf - y_ref)) < 1e-2, "bf16 path mismatch vs reference"

    # --- config 2: exercise the streamed-H accumulator path (pl.when init /
    # finalize) plus a ragged last row block (M=48 with tm=32).
    x2, w1_2, b1_2, w2_2, b2_2 = make(kb, 2, 24, 128)
    y2_ref = _ref(x2, w1_2, b1_2, w2_2, b2_2)
    y2 = feed_forward(x2, w1_2, b1_2, w2_2, b2_2, tm=32,
                      compute_dtype=jnp.float32, h_block=128)
    jax.block_until_ready(y2)
    assert y2.shape == x2.shape
    assert jnp.max(jnp.abs(y2 - y2_ref)) < 5e-3, "streamed-H path mismatch"

    print("KERNEL_OK")
</pallas_src>

<mosaic_0001>
module attributes {stable_mosaic.version = 11 : i64} {
  func.func @_ffwd_kernel(%arg0: i32, %arg1: i32, %arg2: memref<16x32xf32, #tpu.memory_space<vmem>>, %arg3: memref<32x128xf32, #tpu.memory_space<vmem>>, %arg4: memref<1x128xf32, #tpu.memory_space<vmem>>, %arg5: memref<128x32xf32, #tpu.memory_space<vmem>>, %arg6: memref<1x32xf32, #tpu.memory_space<vmem>>, %arg7: memref<16x32xf32, #tpu.memory_space<vmem>>, %arg8: memref<16x32xf32, #tpu.memory_space<vmem>>) attributes {dimension_semantics = [#tpu.dimension_semantics<parallel>, #tpu.dimension_semantics<arbitrary>], iteration_bounds = array<i64: 1, 1>, scalar_prefetch = 0 : i64, scratch_operands = 1 : i64, tpu.core_type = #tpu.core_type<tc>, window_params = [{transform_indices = @transform_0, window_bounds = array<i64: 16, 32>}, {pipeline_mode = #tpu.pipeline_mode<synchronous>, transform_indices = @transform_1, window_bounds = array<i64: 32, 128>}, {pipeline_mode = #tpu.pipeline_mode<synchronous>, transform_indices = @transform_2, window_bounds = array<i64: 1, 128>}, {pipeline_mode = #tpu.pipeline_mode<synchronous>, transform_indices = @transform_3, window_bounds = array<i64: 128, 32>}, {pipeline_mode = #tpu.pipeline_mode<synchronous>, transform_indices = @transform_4, window_bounds = array<i64: 1, 32>}, {transform_indices = @transform_5, window_bounds = array<i64: 16, 32>}]} {
    %c0_i32 = arith.constant 0 : i32
    %0 = arith.cmpi eq, %arg1, %c0_i32 : i32
    %1 = arith.extui %0 : i1 to i32
    %c0_i32_0 = arith.constant 0 : i32
    %2 = arith.cmpi ne, %1, %c0_i32_0 : i32
    scf.if %2 {
      %cst_31 = arith.constant 0.000000e+00 : f32
      %58 = vector.broadcast %cst_31 : f32 to vector<16x32xf32>
      %c0_32 = arith.constant 0 : index
      %c0_33 = arith.constant 0 : index
      %59 = vector.load %arg8[%c0_32, %c0_33] : memref<16x32xf32, #tpu.memory_space<vmem>>, vector<16x32xf32>
      tpu.vector_store %arg8[%c0_32, %c0_33], %58 {strides = array<i32>} : memref<16x32xf32, #tpu.memory_space<vmem>>, vector<16x32xf32>,
    } else {
    }
    %c0 = arith.constant 0 : index
    %c0_1 = arith.constant 0 : index
    %3 = vector.load %arg2[%c0, %c0_1] : memref<16x32xf32, #tpu.memory_space<vmem>>, vector<16x32xf32>
    %c0_2 = arith.constant 0 : index
    %c0_3 = arith.constant 0 : index
    %4 = vector.load %arg3[%c0_2, %c0_3] : memref<32x128xf32, #tpu.memory_space<vmem>>, vector<32x128xf32>
    %cst = arith.constant dense<0.000000e+00> : vector<16x128xf32>
    %5 = tpu.matmul %3, %4, %cst {dimension_numbers = #tpu.dot_dimension_numbers<[1], [0], [0], [1], [0, 0, 1, 1], [], []>} : vector<16x32xf32>, vector<32x128xf32>, vector<16x128xf32> -> vector<16x128xf32>
    %c0_4 = arith.constant 0 : index
    %c0_5 = arith.constant 0 : index
    %6 = vector.load %arg4[%c0_4, %c0_5] : memref<1x128xf32, #tpu.memory_space<vmem>>, vector<1x128xf32>
    %7 = vector.broadcast %6 : vector<1x128xf32> to vector<16x128xf32>
    %8 = arith.addf %5, %7 : vector<16x128xf32>
    %cst_6 = arith.constant 5.000000e-01 : f32
    %9 = vector.broadcast %cst_6 : f32 to vector<16x128xf32>
    %10 = arith.mulf %9, %8 : vector<16x128xf32>
    %cst_7 = arith.constant 0.707106769 : f32
    %11 = vector.broadcast %cst_7 : f32 to vector<16x128xf32>
    %12 = arith.mulf %8, %11 : vector<16x128xf32>
    %cst_8 = arith.constant 0.000000e+00 : f32
    %13 = vector.broadcast %cst_8 : f32 to vector<16x128xf32>
    %14 = arith.cmpf olt, %12, %13 : vector<16x128xf32>
    %cst_9 = arith.constant -1.000000e+00 : f32
    %cst_10 = arith.constant 1.000000e+00 : f32
    %15 = vector.broadcast %cst_9 : f32 to vector<16x128xf32>
    %16 = vector.broadcast %cst_10 : f32 to vector<16x128xf32>
    %17 = arith.select %14, %15, %16 : vector<16x128xi1>, vector<16x128xf32>
    %18 = math.absf %12 : vector<16x128xf32>
    %cst_11 = arith.constant 0.327591091 : f32
    %19 = vector.broadcast %cst_11 : f32 to vector<16x128xf32>
    %20 = arith.mulf %19, %18 : vector<16x128xf32>
    %cst_12 = arith.constant 1.000000e+00 : f32
    %21 = vector.broadcast %cst_12 : f32 to vector<16x128xf32>
    %22 = arith.addf %21, %20 : vector<16x128xf32>
    %cst_13 = arith.constant 1.000000e+00 : f32
    %23 = vector.broadcast %cst_13 : f32 to vector<16x128xf32>
    %24 = arith.divf %23, %22 : vector<16x128xf32>
    %cst_14 = arith.constant 1.06140542 : f32
    %25 = vector.broadcast %cst_14 : f32 to vector<16x128xf32>
    %26 = arith.mulf %25, %24 : vector<16x128xf32>
    %cst_15 = arith.constant -1.45315206 : f32
    %27 = vector.broadcast %cst_15 : f32 to vector<16x128xf32>
    %28 = arith.addf %26, %27 : vector<16x128xf32>
    %29 = arith.mulf %28, %24 : vector<16x128xf32>
    %cst_16 = arith.constant 1.42141378 : f32
    %30 = vector.broadcast %cst_16 : f32 to vector<16x128xf32>
    %31 = arith.addf %29, %30 : vector<16x128xf32>
    %32 = arith.mulf %31, %24 : vector<16x128xf32>
    %cst_17 = arith.constant -0.284496725 : f32
    %33 = vector.broadcast %cst_17 : f32 to vector<16x128xf32>
    %34 = arith.addf %32, %33 : vector<16x128xf32>
    %35 = arith.mulf %34, %24 : vector<16x128xf32>
    %cst_18 = arith.constant 0.254829586 : f32
    %36 = vector.broadcast %cst_18 : f32 to vector<16x128xf32>
    %37 = arith.addf %35, %36 : vector<16x128xf32>
    %38 = arith.mulf %37, %24 : vector<16x128xf32>
    %39 = arith.mulf %18, %18 : vector<16x128xf32>
    %cst_19 = arith.constant 0.000000e+00 : f32
    %40 = vector.broadcast %cst_19 : f32 to vector<16x128xf32>
    %41 = arith.subf %40, %39 : vector<16x128xf32>
    %42 = math.exp %41 : vector<16x128xf32>
    %43 = arith.mulf %38, %42 : vector<16x128xf32>
    %cst_20 = arith.constant 1.000000e+00 : f32
    %44 = vector.broadcast %cst_20 : f32 to vector<16x128xf32>
    %45 = arith.subf %44, %43 : vector<16x128xf32>
    %46 = arith.mulf %17, %45 : vector<16x128xf32>
    %cst_21 = arith.constant 1.000000e+00 : f32
    %47 = vector.broadcast %cst_21 : f32 to vector<16x128xf32>
    %48 = arith.addf %47, %46 : vector<16x128xf32>
    %49 = arith.mulf %10, %48 : vector<16x128xf32>
    %c0_22 = arith.constant 0 : index
    %c0_23 = arith.constant 0 : index
    %50 = vector.load %arg8[%c0_22, %c0_23] : memref<16x32xf32, #tpu.memory_space<vmem>>, vector<16x32xf32>
    %c0_24 = arith.constant 0 : index
    %c0_25 = arith.constant 0 : index
    %51 = vector.load %arg5[%c0_24, %c0_25] : memref<128x32xf32, #tpu.memory_space<vmem>>, vector<128x32xf32>
    %cst_26 = arith.constant dense<0.000000e+00> : vector<16x32xf32>
    %52 = tpu.matmul %49, %51, %cst_26 {dimension_numbers = #tpu.dot_dimension_numbers<[1], [0], [0], [1], [0, 0, 1, 1], [], []>} : vector<16x128xf32>, vector<128x32xf32>, vector<16x32xf32> -> vector<16x32xf32>
    %53 = arith.addf %50, %52 : vector<16x32xf32>
    %c0_27 = arith.constant 0 : index
    %c0_28 = arith.constant 0 : index
    %54 = vector.load %arg8[%c0_27, %c0_28] : memref<16x32xf32, #tpu.memory_space<vmem>>, vector<16x32xf32>
    tpu.vector_store %arg8[%c0_27, %c0_28], %53 {strides = array<i32>} : memref<16x32xf32, #tpu.memory_space<vmem>>, vector<16x32xf32>,
    %c0_i32_29 = arith.constant 0 : i32
    %55 = arith.cmpi eq, %arg1, %c0_i32_29 : i32
    %56 = arith.extui %55 : i1 to i32
    %c0_i32_30 = arith.constant 0 : i32
    %57 = arith.cmpi ne, %56, %c0_i32_30 : i32
    scf.if %57 {
      %c0_31 = arith.constant 0 : index
      %c0_32 = arith.constant 0 : index
      %58 = vector.load %arg8[%c0_31, %c0_32] : memref<16x32xf32, #tpu.memory_space<vmem>>, vector<16x32xf32>
      %c0_33 = arith.constant 0 : index
      %c0_34 = arith.constant 0 : index
      %59 = vector.load %arg6[%c0_33, %c0_34] : memref<1x32xf32, #tpu.memory_space<vmem>>, vector<1x32xf32>
      %60 = vector.broadcast %59 : vector<1x32xf32> to vector<16x32xf32>
      %61 = arith.addf %58, %60 : vector<16x32xf32>
      %c0_35 = arith.constant 0 : index
      %c0_36 = arith.constant 0 : index
      %62 = vector.load %arg7[%c0_35, %c0_36] : memref<16x32xf32, #tpu.memory_space<vmem>>, vector<16x32xf32>
      tpu.vector_store %arg7[%c0_35, %c0_36], %61 {strides = array<i32>} : memref<16x32xf32, #tpu.memory_space<vmem>>, vector<16x32xf32>,
    } else {
    }
    return
  }
  func.func @transform_0(%arg0: i32, %arg1: i32) -> (i32, i32) {
    %c0_i32 = arith.constant 0 : i32
    %c0_i32_0 = arith.constant 0 : i32
    return %arg0, %c0_i32 : i32, i32
  }
  func.func @transform_1(%arg0: i32, %arg1: i32) -> (i32, i32) {
    %c0_i32 = arith.constant 0 : i32
    %c0_i32_0 = arith.constant 0 : i32
    return %c0_i32, %arg1 : i32, i32
  }
  func.func @transform_2(%arg0: i32, %arg1: i32) -> (i32, i32) {
    %c0_i32 = arith.constant 0 : i32
    %c0_i32_0 = arith.constant 0 : i32
    return %c0_i32, %arg1 : i32, i32
  }
  func.func @transform_3(%arg0: i32, %arg1: i32) -> (i32, i32) {
    %c0_i32 = arith.constant 0 : i32
    %c0_i32_0 = arith.constant 0 : i32
    return %arg1, %c0_i32 : i32, i32
  }
  func.func @transform_4(%arg0: i32, %arg1: i32) -> (i32, i32) {
    %c0_i32 = arith.constant 0 : i32
    %c0_i32_0 = arith.constant 0 : i32
    %c0_i32_1 = arith.constant 0 : i32
    return %c0_i32, %c0_i32_0 : i32, i32
  }
  func.func @transform_5(%arg0: i32, %arg1: i32) -> (i32, i32) {
    %c0_i32 = arith.constant 0 : i32
    %c0_i32_0 = arith.constant 0 : i32
    return %arg0, %c0_i32 : i32, i32
  }
}

</mosaic_0001>

<llo_original>
// kernel: feed_forward.1
$region0: #{feed_forward.1}
  #allocation0 [shape = 'u32[]', space=smem, size = 0x4, offset = 0x4, fixed_abs, tag = 'smem constant byte address 0x4 - core index']
  #allocation1 [shape = 'u32[144,128]{1,0:T(1,128)}', space=vmem, size = 0x12000, scoped, tag = 'internal scratch']
  #allocation2 [shape = 'f32[16,32]{1,0:T(8,128)}', space=vmem, size = 0x2000, scoped, tag = 'scratch operand']
  %s0 = inlined_call_operand.vmem [shape: f32[16,32], index: 0, kind: input, shape index: {}]
  %s1 = inlined_call_operand.vmem [shape: f32[32,128], index: 1, kind: input, shape index: {}]
  %s2 = inlined_call_operand.vmem [shape: f32[1,128], index: 2, kind: input, shape index: {}]
  %s3 = inlined_call_operand.vmem [shape: f32[128,32], index: 3, kind: input, shape index: {}]
  %s4 = inlined_call_operand.vmem [shape: f32[1,32], index: 4, kind: input, shape index: {}]
  %s5 = inlined_call_operand.hbm [shape: f32[16,32], index: 5, kind: output, shape index: {}]
  %s6 = sld [smem:[#allocation0]]
  $region38: #{feed_forward.1} parent=0
    _
  %s8 = ssub.s32 1, %s6
  %s9 = scalar_select 0, %s8, %s6
  $region1: #{feed_forward.1} parent=0
    #allocation3 [shape = 'u8[8192]{0}', space=vmem, size = 0x2000, scoped, tag = 'output window, operand 0, single buffered']
    #allocation4 [shape = 's32[1]{0}', space=sflag, size = 0x4, scoped, tag = 'scoped memory for feed_forward.1']
    %10 = vsyncpa [#allocation4], 0
    // Predicated region
    $region2: #{feed_forward.1} parent=1 // pred_check
      _
    $region3: #{feed_forward.1} parent=1 // pred_check_branch
      %12 = sbr.rel (0) target = $region5
    $region4: #{feed_forward.1} parent=1 // pred_region
      _
    $region5: #{feed_forward.1} parent=1 // pred_fallthru
      _
    // Predicated region
    $region6: #{feed_forward.1} parent=1 // pred_check
      _
    $region7: #{feed_forward.1} parent=1 // pred_check_branch
      %14 = sbr.rel (0) target = $region9
    $region8: #{feed_forward.1} parent=1 // pred_region
      _
    $region9: #{feed_forward.1} parent=1 // pred_fallthru
      _
    // Predicated region
    $region10: #{feed_forward.1} parent=1 // pred_check
      _
    $region11: #{feed_forward.1} parent=1 // pred_check_branch
      %16 = sbr.rel (0) target = $region13
    $region12: #{feed_forward.1} parent=1 // pred_region
      _
    $region13: #{feed_forward.1} parent=1 // pred_fallthru
      _
    // Predicated region
    $region14: #{feed_forward.1} parent=1 // pred_check
      _
    $region15: #{feed_forward.1} parent=1 // pred_check_branch
      %18 = sbr.rel (0) target = $region17
    $region16: #{feed_forward.1} parent=1 // pred_region
      _
    $region17: #{feed_forward.1} parent=1 // pred_fallthru
      _
    // Predicated region
    $region18: #{feed_forward.1} parent=1 // pred_check
      _
    $region19: #{feed_forward.1} parent=1 // pred_check_branch
      %20 = sbr.rel (0) target = $region21
    $region20: #{feed_forward.1} parent=1 // pred_region
      _
    $region21: #{feed_forward.1} parent=1 // pred_fallthru
      _
    %p21 = scmp.eq.s32.totalorder 0, 0
    // Predicated region
    $region22: #{feed_forward.1} parent=1 // pred_check
      %p22 = pneg %p21
    $region23: #{feed_forward.1} parent=1 // pred_check_branch
      %24 = sbr.rel (%p22) target = $region25
    $region24: #{feed_forward.1} parent=1 // pred_region
      %vm25 = vcmask 261120
      %26 = vst.msk [vmem:[#allocation2] sm:$0xff] %vm25, 0.0
      %27 = vst.msk [vmem:[#allocation2 + $0x8] sm:$0xff] %vm25, 0.0
    $region25: #{feed_forward.1} parent=1 // pred_fallthru
      _
    %v28 = vld [vmem:[%s0] sm:$0xff]
    %v29 = vld [vmem:[%s0 + $0x8] sm:$0xff]
    %v30 = vld [vmem:[%s1] sm:$0xff]
    %v31 = vld [vmem:[%s1 + $0x8] sm:$0xff]
    %v32 = vld [vmem:[%s1 + $0x10] sm:$0xff]
    %v33 = vld [vmem:[%s1 + $0x18] sm:$0xff]
    %v34 = vld [vmem:[%s2] sm:$0x1]
    %v36 = vlaneseq
    %v37 = vshrl.u32 %v36, 7
    %v38 = vsub.s32 0, %v37
    %v39 = vrot.slane %v34, %v38
    %vm41 = vcmask 261120
    %v43 = vsel %vm41, %v28, 0
    %v46 = vsel %vm41, %v29, 0
    %48 = vmatprep.subr.mxu0 0.0
    %49 = vmatpush1.msra.mxu0 %v30
    %50 = vmatprep.subr.mxu0 0.0
    %51 = vmatpush1.msra.mxu0 %v31
    %52 = vmatprep.subr.mxu0 0.0
    %53 = vmatpush1.msra.mxu0 %v32
    %54 = vmatprep.subr.mxu0 0.0
    %55 = vmatpush1.msra.mxu0 %v33
    %56 = vmatprep.subr.mxu0 0.0
    %57 = vmatpush1.msra.mxu0 0.0
    %58 = vmatprep.subr.mxu0 0.0
    %59 = vmatpush1.msra.mxu0 0.0
    %60 = vmatprep.subr.mxu0 0.0
    %61 = vmatpush1.msra.mxu0 0.0
    %62 = vmatprep.subr.mxu0 0.0
    %63 = vmatpush1.msra.mxu0 0.0
    %64 = vmatprep.subr.mxu0 0.0
    %65 = vmatpush1.msra.mxu0 0.0
    %66 = vmatprep.subr.mxu0 0.0
    %67 = vmatpush1.msra.mxu0 0.0
    %68 = vmatprep.subr.mxu0 0.0
    %69 = vmatpush1.msra.mxu0 0.0
    %70 = vmatprep.subr.mxu0 0.0
    %71 = vmatpush1.msra.mxu0 0.0
    %72 = vmatprep.subr.mxu0 0.0
    %73 = vmatpush1.msra.mxu0 0.0
    %74 = vmatprep.subr.mxu0 0.0
    %75 = vmatpush1.msra.mxu0 0.0
    %76 = vmatprep.subr.mxu0 0.0
    %77 = vmatpush1.msra.mxu0 0.0
    %78 = vmatprep.subr.mxu0 0.0
    %79 = vmatpush1.msra.mxu0 0.0
    %80 = vmatprep.subr.mxu0 0.0
    %81 = vmatpush1.msra.mxu0 0.0
    %82 = vmatprep.subr.mxu0 0.0
    %83 = vmatpush1.msra.mxu0 0.0
    %84 = vmatprep.subr.mxu0 0.0
    %85 = vmatpush1.msra.mxu0 0.0
    %86 = vmatprep.subr.mxu0 0.0
    %87 = vmatpush1.msra.mxu0 0.0
    %88 = vmatprep.subr.mxu0 0.0
    %89 = vmatpush1.msra.mxu0 0.0
    %90 = vmatprep.subr.mxu0 0.0
    %91 = vmatpush1.msra.mxu0 0.0
    %92 = vmatprep.subr.mxu0 0.0
    %93 = vmatpush1.msra.mxu0 0.0
    %94 = vmatprep.subr.mxu0 0.0
    %95 = vmatpush1.msra.mxu0 0.0
    %96 = vmatprep.subr.mxu0 0.0
    %97 = vmatpush1.msra.mxu0 0.0
    %98 = vmatprep.subr.mxu0 0.0
    %99 = vmatpush1.msra.mxu0 0.0
    %100 = vmatprep.subr.mxu0 0.0
    %101 = vmatpush1.msra.mxu0 0.0
    %102 = vmatprep.subr.mxu0 0.0
    %103 = vmatpush1.msra.mxu0 0.0
    %104 = vmatprep.subr.mxu0 0.0
    %105 = vmatpush1.msra.mxu0 0.0
    %106 = vmatprep.subr.mxu0 0.0
    %107 = vmatpush1.msra.mxu0 0.0
    %108 = vmatprep.subr.mxu0 0.0
    %109 = vmatpush1.msra.mxu0 0.0
    %110 = vmatprep.subr.mxu0 0.0
    %111 = vmatpush1.msra.mxu0 0.0
    %112 = vmatprep.mubr.f32.mxu0 0.0
    %113 = vmatmul.mubr.f32.gmra.mrb[0].mxu0 %v43
    %v114 = vpop.f32.mrb[0].mxu0
    %v115 = vadd.f32 %v39, %v114
    %v116 = vpop.f32.mrb[0].mxu0
    %117 = vmatprep.mubr.f32.mxu0 0.0
    %118 = vmatmul.mubr.f32.gmra.mrb[0].mxu0 %v46
    %v119 = vpop.f32.mrb[0].mxu0
    %v120 = vadd.f32 %v39, %v119
    %v121 = vpop.f32.mrb[0].mxu0
    %122 = vdwg.mxu0
    %v123 = vmul.f32 %v115, 0.5
    %v124 = vmul.f32 %v120, 0.5
    %v125 = vmul.f32 %v115, 0.70710677
    %v126 = vmul.f32 %v120, 0.70710677
    %vm127 = vcmp.lt.f32.partialorder %v125, 0.0
    %vm128 = vcmp.lt.f32.partialorder %v126, 0.0
    %v129 = vsel %vm127, -1.0, 1.0
    %v130 = vsel %vm128, -1.0, 1.0
    %v131 = vand.u32 2147483647, %v125
    %v132 = vand.u32 2147483647, %v126
    %v133 = vmul.f32 %v131, 0.3275911
    %v134 = vmul.f32 %v132, 0.3275911
    %v135 = vadd.f32 %v133, 1.0
    %v136 = vadd.f32 %v134, 1.0
    %v137 = vrcp.pop %v135
    %v138 = vmul.f32 1.0, %v137
    %v139 = vrcp.pop %v136
    %v140 = vmul.f32 1.0, %v139
    %v141 = vmul.f32 %v138, 1.0614054
    %v142 = vmul.f32 %v140, 1.0614054
    %v143 = vadd.f32 %v141, -1.4531521
    %v144 = vadd.f32 %v142, -1.4531521
    %v145 = vmul.f32 %v143, %v138
    %v146 = vmul.f32 %v144, %v140
    %v147 = vadd.f32 %v145, 1.4214138
    %v148 = vadd.f32 %v146, 1.4214138
    %v149 = vmul.f32 %v147, %v138
    %v150 = vmul.f32 %v148, %v140
    %v151 = vadd.f32 %v149, -0.28449672
    %v152 = vadd.f32 %v150, -0.28449672
    %v153 = vmul.f32 %v151, %v138
    %v154 = vmul.f32 %v152, %v140
    %v155 = vadd.f32 %v153, 0.2548296
    %v156 = vadd.f32 %v154, 0.2548296
    %v157 = vmul.f32 %v155, %v138
    %v158 = vmul.f32 %v156, %v140
    %v159 = vmul.f32 %v131, %v131
    %v160 = vmul.f32 %v132, %v132
    %v161 = vsub.f32 0.0, %v159
    %v162 = vsub.f32 0.0, %v160
    %v163 = vmul.f32 %v161, 1.442695
    %v164 = vpow.pop %v163
    %v165 = vmul.f32 %v162, 1.442695
    %v166 = vpow.pop %v165
    %v167 = vmul.f32 %v157, %v164
    %v168 = vmul.f32 %v158, %v166
    %v169 = vsub.f32 1.0, %v167
    %v170 = vsub.f32 1.0, %v168
    %v171 = vmul.f32 %v129, %v169
    %v172 = vmul.f32 %v130, %v170
    %v173 = vadd.f32 %v171, 1.0
    %v174 = vadd.f32 %v172, 1.0
    %v175 = vmul.f32 %v123, %v173
    %v176 = vmul.f32 %v124, %v174
    %v177 = vld [vmem:[#allocation2] sm:$0xff]
    %v178 = vld [vmem:[#allocation2 + $0x8] sm:$0xff]
    %v179 = vld [vmem:[%s3] sm:$0xff]
    %v180 = vld [vmem:[%s3 + $0x8] sm:$0xff]
    %v181 = vld [vmem:[%s3 + $0x10] sm:$0xff]
    %v182 = vld [vmem:[%s3 + $0x18] sm:$0xff]
    %v183 = vld [vmem:[%s3 + $0x20] sm:$0xff]
    %v184 = vld [vmem:[%s3 + $0x28] sm:$0xff]
    %v185 = vld [vmem:[%s3 + $0x30] sm:$0xff]
    %v186 = vld [vmem:[%s3 + $0x38] sm:$0xff]
    %v187 = vld [vmem:[%s3 + $0x40] sm:$0xff]
    %v188 = vld [vmem:[%s3 + $0x48] sm:$0xff]
    %v189 = vld [vmem:[%s3 + $0x50] sm:$0xff]
    %v190 = vld [vmem:[%s3 + $0x58] sm:$0xff]
    %v191 = vld [vmem:[%s3 + $0x60] sm:$0xff]
    %v192 = vld [vmem:[%s3 + $0x68] sm:$0xff]
    %v193 = vld [vmem:[%s3 + $0x70] sm:$0xff]
    %v194 = vld [vmem:[%s3 + $0x78] sm:$0xff]
    %195 = vmatprep.subr.mxu0 0.0
    %196 = vmatpush1.msra.mxu0 %v179
    %197 = vmatprep.subr.mxu0 0.0
    %198 = vmatpush1.msra.mxu0 %v180
    %199 = vmatprep.subr.mxu0 0.0
    %200 = vmatpush1.msra.mxu0 %v181
    %201 = vmatprep.subr.mxu0 0.0
    %202 = vmatpush1.msra.mxu0 %v182
    %203 = vmatprep.subr.mxu0 0.0
    %204 = vmatpush1.msra.mxu0 %v183
    %205 = vmatprep.subr.mxu0 0.0
    %206 = vmatpush1.msra.mxu0 %v184
    %207 = vmatprep.subr.mxu0 0.0
    %208 = vmatpush1.msra.mxu0 %v185
    %209 = vmatprep.subr.mxu0 0.0
    %210 = vmatpush1.msra.mxu0 %v186
    %211 = vmatprep.subr.mxu0 0.0
    %212 = vmatpush1.msra.mxu0 %v187
    %213 = vmatprep.subr.mxu0 0.0
    %214 = vmatpush1.msra.mxu0 %v188
    %215 = vmatprep.subr.mxu0 0.0
    %216 = vmatpush1.msra.mxu0 %v189
    %217 = vmatprep.subr.mxu0 0.0
    %218 = vmatpush1.msra.mxu0 %v190
    %219 = vmatprep.subr.mxu0 0.0
    %220 = vmatpush1.msra.mxu0 %v191
    %221 = vmatprep.subr.mxu0 0.0
    %222 = vmatpush1.msra.mxu0 %v192
    %223 = vmatprep.subr.mxu0 0.0
    %224 = vmatpush1.msra.mxu0 %v193
    %225 = vmatprep.subr.mxu0 0.0
    %226 = vmatpush1.msra.mxu0 %v194
    %227 = vmatprep.subr.mxu0 0.0
    %228 = vmatpush1.msra.mxu0 0.0
    %229 = vmatprep.subr.mxu0 0.0
    %230 = vmatpush1.msra.mxu0 0.0
    %231 = vmatprep.subr.mxu0 0.0
    %232 = vmatpush1.msra.mxu0 0.0
    %233 = vmatprep.subr.mxu0 0.0
    %234 = vmatpush1.msra.mxu0 0.0
    %235 = vmatprep.subr.mxu0 0.0
    %236 = vmatpush1.msra.mxu0 0.0
    %237 = vmatprep.subr.mxu0 0.0
    %238 = vmatpush1.msra.mxu0 0.0
    %239 = vmatprep.subr.mxu0 0.0
    %240 = vmatpush1.msra.mxu0 0.0
    %241 = vmatprep.subr.mxu0 0.0
    %242 = vmatpush1.msra.mxu0 0.0
    %243 = vmatprep.subr.mxu0 0.0
    %244 = vmatpush1.msra.mxu0 0.0
    %245 = vmatprep.subr.mxu0 0.0
    %246 = vmatpush1.msra.mxu0 0.0
    %247 = vmatprep.subr.mxu0 0.0
    %248 = vmatpush1.msra.mxu0 0.0
    %249 = vmatprep.subr.mxu0 0.0
    %250 = vmatpush1.msra.mxu0 0.0
    %251 = vmatprep.subr.mxu0 0.0
    %252 = vmatpush1.msra.mxu0 0.0
    %253 = vmatprep.subr.mxu0 0.0
    %254 = vmatpush1.msra.mxu0 0.0
    %255 = vmatprep.subr.mxu0 0.0
    %256 = vmatpush1.msra.mxu0 0.0
    %257 = vmatprep.subr.mxu0 0.0
    %258 = vmatpush1.msra.mxu0 0.0
    %259 = vmatprep.mubr.f32.mxu0 0.0
    %260 = vmatmul.mubr.f32.gmra.mrb[0].mxu0 %v175
    %v261 = vpop.f32.mrb[0].mxu0
    %v262 = vadd.f32 0.0, %v261
    %v263 = vpop.f32.mrb[0].mxu0
    %264 = vmatprep.mubr.f32.mxu0 0.0
    %265 = vmatmul.mubr.f32.gmra.mrb[0].mxu0 %v176
    %v266 = vpop.f32.mrb[0].mxu0
    %v267 = vadd.f32 0.0, %v266
    %v268 = vpop.f32.mrb[0].mxu0
    %269 = vdwg.mxu0
    %v270 = vadd.f32 %v177, %v262
    %v271 = vadd.f32 %v178, %v267
    %272 = vst.msk [vmem:[#allocation2] sm:$0xff] %vm41, %v270
    %273 = vst.msk [vmem:[#allocation2 + $0x8] sm:$0xff] %vm41, %v271
    // Predicated region
    $region26: #{feed_forward.1} parent=1 // pred_check
      %p274 = pneg %p21
    $region27: #{feed_forward.1} parent=1 // pred_check_branch
      %276 = sbr.rel (%p274) target = $region29
    $region28: #{feed_forward.1} parent=1 // pred_region
      %v277 = vld [vmem:[#allocation2] sm:$0xff]
      %v278 = vld [vmem:[#allocation2 + $0x8] sm:$0xff]
      %v279 = vld [vmem:[%s4] sm:$0x1]
      %v281 = vlaneseq
      %v282 = vshrl.u32 %v281, 7
      %v283 = vsub.s32 0, %v282
      %v284 = vrot.slane %v279, %v283
      %v286 = vadd.f32 %v277, %v284
      %v287 = vadd.f32 %v278, %v284
      %288 = vst.msk [vmem:[#allocation3] sm:$0xff] %vm41, %v286
      %289 = vst.msk [vmem:[#allocation3 + $0x8] sm:$0xff] %vm41, %v287
    $region29: #{feed_forward.1} parent=1 // pred_fallthru
      _
    // Predicated region
    $region30: #{feed_forward.1} parent=1 // pred_check
      _
    $region31: #{feed_forward.1} parent=1 // pred_check_branch
      %291 = sbr.rel (0) target = $region33
    $region32: #{feed_forward.1} parent=1 // pred_region
      %s293 = ssub.s32 256, 256
      %294 = vsyncadd [#allocation4], %s293
      %s295 = sshll.u32 [#allocation3], 4
      %s296 = int_to_ptr.vmem [resolvable:$true] %s295
      %301 = dma.vmem_to_hbm [thread:$0]  %s296, 256, %s5, [#allocation4], 128, 128, 8
    $region33: #{feed_forward.1} parent=1 // pred_fallthru
      _
    // Predicated region
    $region34: #{feed_forward.1} parent=1 // pred_check
      _
    $region35: #{feed_forward.1} parent=1 // pred_check_branch
      %303 = sbr.rel (0) target = $region37
    $region36: #{feed_forward.1} parent=1 // pred_region
      %304 = dma.done [#allocation4], 256
    $region37: #{feed_forward.1} parent=1 // pred_fallthru
      _
    %305 = vsyncpa [#allocation4], 1

</llo_original>
